<compile_context>
chip_gen: v5e
topology: v5e:2x2
jax: 0.10.0
libtpu: 0.0.40
codegen_flags: <defaults>
</compile_context>

<pallas_src>
import jax
import jax.numpy as jnp
from jax.experimental import pallas as pl
from jax.experimental.pallas import tpu as pltpu

# Max rows per grid step.
_TB_MAX = 8192


def _cross_interaction_kernel(x1_ref, x2_ref, o_ref):
    dim1 = x1_ref.shape[1]
    dim2 = x2_ref.shape[1]

    # Promote once to f32; reductions and the broadcast-multiply stay in f32,
    # single cast back to the output dtype at the stores.
    x1 = x1_ref[...].astype(jnp.float32)               # (TB, dim1)
    x2 = x2_ref[...].astype(jnp.float32)               # (TB, dim2)

    inv_d1 = jnp.float32(1.0 / dim1)
    inv_d2 = jnp.float32(1.0 / dim2)

    mean_x2 = jnp.sum(x2, axis=1, keepdims=True) * inv_d2   # (TB, 1)
    mean_x1 = jnp.sum(x1, axis=1, keepdims=True) * inv_d1   # (TB, 1)

    # Fused output tile: [:, :dim1] = x1 * mean(x2), [:, dim1:] = x2 * mean(x1).
    # The second store lands at a sub-128 lane offset (masked vst + roll);
    # that work is trivially hidden under the per-step DMA.
    o_ref[:, :dim1] = (x1 * mean_x2).astype(o_ref.dtype)
    o_ref[:, dim1:] = (x2 * mean_x1).astype(o_ref.dtype)


def _round_up(x, m):
    return ((x + m - 1) // m) * m


def _pick_batch_tile(batch, dtype):
    """Pick a sublane-aligned batch tile; prefer >=2 grid blocks (v7x megacore)."""
    mult = 16 if jnp.dtype(dtype).itemsize == 2 else 8
    if batch <= 2 * mult:
        # Too small to split: one full-extent block (always a legal shape).
        return batch
    half = (batch + 1) // 2
    return min(_TB_MAX, _round_up(half, mult))


def _vmem_budget_bytes(tb, dim1, dim2, itemsize):
    """Scoped-VMEM budget accounting for 128-lane padding of narrow features."""
    padded_feats = (_round_up(dim1, 128) + _round_up(dim2, 128)
                    + _round_up(dim1 + dim2, 128))
    stream_bytes = tb * padded_feats * itemsize   # one x1/x2/out buffer set
    temp_bytes = tb * padded_feats * 4            # f32 compute temporaries
    need = 2 * stream_bytes + temp_bytes + (2 << 20)   # double-buffered + slack
    # Floor keeps us at/above sane defaults; cap stays inside v7x's 64 MiB.
    return int(min(56 << 20, max(need, 24 << 20)))


def cross_interaction(x1, x2):
    """x1: (B, dim1), x2: (B, dim2) -> (B, dim1 + dim2)."""
    assert x1.shape[0] == x2.shape[0]
    batch, dim1 = x1.shape
    _, dim2 = x2.shape

    tb = _pick_batch_tile(batch, x1.dtype)
    grid = (pl.cdiv(batch, tb),)
    vmem_limit = _vmem_budget_bytes(tb, dim1, dim2, jnp.dtype(x1.dtype).itemsize)

    return pl.pallas_call(
        _cross_interaction_kernel,
        out_shape=jax.ShapeDtypeStruct((batch, dim1 + dim2), x1.dtype),
        grid=grid,
        in_specs=[
            pl.BlockSpec((tb, dim1), lambda i: (i, 0)),
            pl.BlockSpec((tb, dim2), lambda i: (i, 0)),
        ],
        out_specs=pl.BlockSpec((tb, dim1 + dim2), lambda i: (i, 0)),
        compiler_params=pltpu.CompilerParams(
            dimension_semantics=("parallel",),
            vmem_limit_bytes=vmem_limit,
        ),
    )(x1, x2)


def _reference(x1, x2):
    # Pure-JAX reference mirroring the PyTorch forward exactly.
    inter = x1[:, :, None] * x2[:, None, :]        # (B, dim1, dim2)
    mean_dim1 = inter.mean(axis=2)                 # (B, dim1)
    mean_dim2 = inter.mean(axis=1)                 # (B, dim2)
    return jnp.concatenate([mean_dim1, mean_dim2], axis=1)


if __name__ == "__main__":
    batch, dim1, dim2 = 2, 32, 64   # CrossInteraction(dim1=32, dim2=64)

    key = jax.random.PRNGKey(0)
    k1, k2 = jax.random.split(key)
    x1 = jax.random.normal(k1, (batch, dim1), dtype=jnp.float32)
    x2 = jax.random.normal(k2, (batch, dim2), dtype=jnp.float32)

    out = cross_interaction(x1, x2)
    out = jax.block_until_ready(out)

    ref = _reference(x1, x2)
    assert out.shape == (batch, dim1 + dim2)
    assert jnp.allclose(out, ref, atol=1e-5, rtol=1e-5)

    print("KERNEL_OK")
</pallas_src>

<mosaic_0001>
module attributes {stable_mosaic.version = 11 : i64} {
  func.func @_cross_interaction_kernel(%arg0: i32, %arg1: memref<2x32xf32, #tpu.memory_space<vmem>>, %arg2: memref<2x64xf32, #tpu.memory_space<vmem>>, %arg3: memref<2x96xf32, #tpu.memory_space<vmem>>) attributes {dimension_semantics = [#tpu.dimension_semantics<parallel>], iteration_bounds = array<i64: 1>, scalar_prefetch = 0 : i64, scratch_operands = 0 : i64, tpu.core_type = #tpu.core_type<tc>, window_params = [{transform_indices = @transform_0, window_bounds = array<i64: 2, 32>}, {transform_indices = @transform_1, window_bounds = array<i64: 2, 64>}, {transform_indices = @transform_2, window_bounds = array<i64: 2, 96>}]} {
    %c0 = arith.constant 0 : index
    %c0_0 = arith.constant 0 : index
    %0 = vector.load %arg1[%c0, %c0_0] : memref<2x32xf32, #tpu.memory_space<vmem>>, vector<2x32xf32>
    %c0_1 = arith.constant 0 : index
    %c0_2 = arith.constant 0 : index
    %1 = vector.load %arg2[%c0_1, %c0_2] : memref<2x64xf32, #tpu.memory_space<vmem>>, vector<2x64xf32>
    %cst = arith.constant dense<0.000000e+00> : vector<2xf32>
    %2 = vector.multi_reduction <add>, %1, %cst [1] : vector<2x64xf32> to vector<2xf32>
    %3 = vector.shape_cast %2 : vector<2xf32> to vector<2x1xf32>
    %cst_3 = arith.constant 1.562500e-02 : f32
    %4 = vector.broadcast %cst_3 : f32 to vector<2x1xf32>
    %5 = arith.mulf %3, %4 : vector<2x1xf32>
    %cst_4 = arith.constant dense<0.000000e+00> : vector<2xf32>
    %6 = vector.multi_reduction <add>, %0, %cst_4 [1] : vector<2x32xf32> to vector<2xf32>
    %7 = vector.shape_cast %6 : vector<2xf32> to vector<2x1xf32>
    %cst_5 = arith.constant 3.125000e-02 : f32
    %8 = vector.broadcast %cst_5 : f32 to vector<2x1xf32>
    %9 = arith.mulf %7, %8 : vector<2x1xf32>
    %10 = vector.broadcast %5 : vector<2x1xf32> to vector<2x32xf32>
    %11 = arith.mulf %0, %10 : vector<2x32xf32>
    %c0_6 = arith.constant 0 : index
    %c0_7 = arith.constant 0 : index
    %12 = vector.load %arg3[%c0_6, %c0_7] : memref<2x96xf32, #tpu.memory_space<vmem>>, vector<2x32xf32>
    tpu.vector_store %arg3[%c0_6, %c0_7], %11 {strides = array<i32>} : memref<2x96xf32, #tpu.memory_space<vmem>>, vector<2x32xf32>,
    %13 = vector.broadcast %9 : vector<2x1xf32> to vector<2x64xf32>
    %14 = arith.mulf %1, %13 : vector<2x64xf32>
    %c0_8 = arith.constant 0 : index
    %c32 = arith.constant 32 : index
    %15 = vector.load %arg3[%c0_8, %c32] : memref<2x96xf32, #tpu.memory_space<vmem>>, vector<2x64xf32>
    tpu.vector_store %arg3[%c0_8, %c32], %14 {strides = array<i32>} : memref<2x96xf32, #tpu.memory_space<vmem>>, vector<2x64xf32>,
    return
  }
  func.func @transform_0(%arg0: i32) -> (i32, i32) {
    %c0_i32 = arith.constant 0 : i32
    %c0_i32_0 = arith.constant 0 : i32
    return %arg0, %c0_i32 : i32, i32
  }
  func.func @transform_1(%arg0: i32) -> (i32, i32) {
    %c0_i32 = arith.constant 0 : i32
    %c0_i32_0 = arith.constant 0 : i32
    return %arg0, %c0_i32 : i32, i32
  }
  func.func @transform_2(%arg0: i32) -> (i32, i32) {
    %c0_i32 = arith.constant 0 : i32
    %c0_i32_0 = arith.constant 0 : i32
    return %arg0, %c0_i32 : i32, i32
  }
}

</mosaic_0001>

<llo_original>
// kernel: tpu_custom_call.1
$region0: #{tpu_custom_call.1}
  #allocation0 [shape = 'u32[]', space=smem, size = 0x4, offset = 0x4, fixed_abs, tag = 'smem constant byte address 0x4 - core index']
  #allocation1 [shape = 'u32[72,128]{1,0:T(1,128)}', space=vmem, size = 0x9000, scoped, tag = 'internal scratch']
  %s0 = inlined_call_operand.hbm [shape: f32[2,32], index: 0, kind: input, shape index: {}]
  %s1 = inlined_call_operand.hbm [shape: f32[2,64], index: 1, kind: input, shape index: {}]
  %s2 = inlined_call_operand.hbm [shape: f32[2,96], index: 2, kind: output, shape index: {}]
  %s3 = sld [smem:[#allocation0]]
  $region26: #{tpu_custom_call.1} parent=0
    _
  %s5 = ssub.s32 1, %s3
  %s6 = scalar_select 0, %s5, %s3
  $region1: #{tpu_custom_call.1} parent=0
    #allocation2 [shape = 'u8[1024]{0}', space=vmem, size = 0x400, scoped, tag = 'input window, operand 0, single buffered']
    #allocation3 [shape = 's32[1]{0}', space=sflag, size = 0x4, scoped, tag = 'scoped memory for tpu_custom_call.1']
    #allocation4 [shape = 's32[1]{0}', space=sflag, size = 0x4, scoped, tag = 'scoped memory for tpu_custom_call.1']
    #allocation5 [shape = 'u8[1024]{0}', space=vmem, size = 0x400, scoped, tag = 'input window, operand 1, single buffered']
    #allocation6 [shape = 's32[1]{0}', space=sflag, size = 0x4, scoped, tag = 'scoped memory for tpu_custom_call.1']
    #allocation7 [shape = 'u8[1024]{0}', space=vmem, size = 0x400, scoped, tag = 'output window, operand 0, single buffered']
    %7 = vsyncpa [#allocation3], 0
    %8 = vsyncpa [#allocation6], 0
    %9 = vsyncpa [#allocation4], 0
    // Predicated region
    $region2: #{tpu_custom_call.1} parent=1 // pred_check
      _
    $region3: #{tpu_custom_call.1} parent=1 // pred_check_branch
      %11 = sbr.rel (0) target = $region5
    $region4: #{tpu_custom_call.1} parent=1 // pred_region
      %13 = vsyncadd [#allocation3], 0
      %s15 = sshll.u32 %s0, 4
      %s16 = int_to_ptr.hbm [resolvable:$true] %s15
      %s17 = sshll.u32 [#allocation2], 4
      %s18 = int_to_ptr.vmem [resolvable:$true] %s17
      %20 = dma.hbm_to_vmem [thread:$0]  %s16, 32, %s18, [#allocation3]
    $region5: #{tpu_custom_call.1} parent=1 // pred_fallthru
      _
    // Predicated region
    $region6: #{tpu_custom_call.1} parent=1 // pred_check
      _
    $region7: #{tpu_custom_call.1} parent=1 // pred_check_branch
      %22 = sbr.rel (0) target = $region9
    $region8: #{tpu_custom_call.1} parent=1 // pred_region
      %24 = vsyncadd [#allocation6], 0
      %s26 = sshll.u32 %s1, 4
      %s27 = int_to_ptr.hbm [resolvable:$true] %s26
      %s28 = sshll.u32 [#allocation5], 4
      %s29 = int_to_ptr.vmem [resolvable:$true] %s28
      %31 = dma.hbm_to_vmem [thread:$0]  %s27, 32, %s29, [#allocation6]
    $region9: #{tpu_custom_call.1} parent=1 // pred_fallthru
      _
    // Predicated region
    $region10: #{tpu_custom_call.1} parent=1 // pred_check
      _
    $region11: #{tpu_custom_call.1} parent=1 // pred_check_branch
      %33 = sbr.rel (0) target = $region13
    $region12: #{tpu_custom_call.1} parent=1 // pred_region
      %35 = dma.done [#allocation3], 32
    $region13: #{tpu_custom_call.1} parent=1 // pred_fallthru
      _
    // Predicated region
    $region14: #{tpu_custom_call.1} parent=1 // pred_check
      _
    $region15: #{tpu_custom_call.1} parent=1 // pred_check_branch
      %37 = sbr.rel (0) target = $region17
    $region16: #{tpu_custom_call.1} parent=1 // pred_region
      %39 = dma.done [#allocation6], 32
    $region17: #{tpu_custom_call.1} parent=1 // pred_fallthru
      _
    %v40 = vld [vmem:[#allocation2] sm:$0x3]
    %v41 = vld [vmem:[#allocation5] sm:$0x3]
    %vm42 = vcmask 517120
    %v43 = vsel %vm42, %v41, 0.0
    %44 = vadd.xlane.f32.xlu0 %v43
    %v45 = vpop.xlane.xlu0 %44
    %v46 = vmul.f32 %v45, 0.015625
    %vm47 = vcmask 254976
    %v48 = vsel %vm47, %v40, 0.0
    %49 = vadd.xlane.f32.xlu0 %v48
    %v50 = vpop.xlane.xlu0 %49
    %v51 = vmul.f32 %v50, 0.03125
    %v52 = vmul.f32 %v40, %v46
    %53 = vst.msk [vmem:[#allocation7] sm:$0x3] %vm47, %v52
    %v54 = vmul.f32 %v41, %v51
    %56 = vrot.lane.b32.xlu0 %v54, 32
    %v57 = vpop.permute.xlu0 %56
    %vm59 = vcmask 779520
    %60 = vst.msk [vmem:[#allocation7] sm:$0x3] %vm59, %v57
    // Predicated region
    $region18: #{tpu_custom_call.1} parent=1 // pred_check
      _
    $region19: #{tpu_custom_call.1} parent=1 // pred_check_branch
      %62 = sbr.rel (0) target = $region21
    $region20: #{tpu_custom_call.1} parent=1 // pred_region
      %64 = vsyncadd [#allocation4], 0
      %s66 = sshll.u32 [#allocation7], 4
      %s67 = int_to_ptr.vmem [resolvable:$true] %s66
      %s68 = sshll.u32 %s2, 4
      %s69 = int_to_ptr.hbm [resolvable:$true] %s68
      %71 = dma.vmem_to_hbm [thread:$0]  %s67, 32, %s69, [#allocation4]
    $region21: #{tpu_custom_call.1} parent=1 // pred_fallthru
      _
    // Predicated region
    $region22: #{tpu_custom_call.1} parent=1 // pred_check
      _
    $region23: #{tpu_custom_call.1} parent=1 // pred_check_branch
      %73 = sbr.rel (0) target = $region25
    $region24: #{tpu_custom_call.1} parent=1 // pred_region
      %75 = dma.done [#allocation4], 32
    $region25: #{tpu_custom_call.1} parent=1 // pred_fallthru
      _
    %76 = vsyncpa [#allocation3], 1
    %77 = vsyncpa [#allocation6], 1
    %78 = vsyncpa [#allocation4], 1

</llo_original>
